<compile_context>
chip_gen: v6e
topology: v6e:2x2x1
jax: 0.10.0
libtpu: 0.0.40
codegen_flags: <defaults>
</compile_context>

<pallas_src>
import math

import jax
import jax.numpy as jnp
from jax.experimental import pallas as pl
from jax.experimental.pallas import tpu as pltpu

_GELU_C = math.sqrt(2.0 / math.pi)


def _round_up(n, m):
    return ((n + m - 1) // m) * m


def _gelu(h):
    # tanh approximation -- matches the PyTorch reference GELU module exactly.
    return 0.5 * h * (1.0 + jnp.tanh(_GELU_C * (h + 0.044715 * h * h * h)))


# ---------------------------------------------------------------------------
# Kernels
# ---------------------------------------------------------------------------
def _ffn_resident_kernel(x_ref, w1_ref, b1_ref, w2_ref, b2_ref, o_ref):
    """Weight-resident path: W1/W2 stay in VMEM, full d_ff reduction per step."""
    # First linear, f32 accumulation on the MXU.
    h = jnp.dot(x_ref[...], w1_ref[...], preferred_element_type=jnp.float32)
    h = h + b1_ref[...]
    # GELU in the (bf16) compute dtype: 2x vreg packing on v6e/v7x VPU/EUP, and the
    # result feeds a bf16 matmul anyway.
    g = _gelu(h.astype(w2_ref.dtype))
    # TODO(synk): training-mode dropout would go here via pltpu.prng_seed +
    # pltpu.stateful_bernoulli; eval mode / p=0 is identity.
    out = jnp.dot(g.astype(w2_ref.dtype), w2_ref[...],
                  preferred_element_type=jnp.float32)
    o_ref[...] = (out + b2_ref[...]).astype(o_ref.dtype)


def _ffn_stream_kernel(x_ref, w1_ref, b1_ref, w2_ref, b2_ref, o_ref, acc_ref):
    """Streaming path: d_ff tiled on an 'arbitrary' grid axis, f32 resident acc."""
    j = pl.program_id(1)

    @pl.when(j == 0)
    def _init():
        # Fold b2 into the accumulator init: the output bias add becomes free.
        acc_ref[...] = jnp.broadcast_to(b2_ref[...], acc_ref.shape)

    h = jnp.dot(x_ref[...], w1_ref[...], preferred_element_type=jnp.float32)
    h = h + b1_ref[...]
    g = _gelu(h.astype(w2_ref.dtype))
    # TODO(synk): training-mode dropout would go here; eval mode is identity.
    acc_ref[...] += jnp.dot(g.astype(w2_ref.dtype), w2_ref[...],
                            preferred_element_type=jnp.float32)

    @pl.when(j == pl.num_programs(1) - 1)
    def _finalize():
        o_ref[...] = acc_ref[...].astype(o_ref.dtype)


# ---------------------------------------------------------------------------
# Host-side helpers
# ---------------------------------------------------------------------------
def _vmem_limit_bytes():
    """Per-chip scoped-VMEM limit (~56 MiB on v7x, up to 100 MiB on v5e/v6e)."""
    try:
        cap = int(pltpu.get_tpu_info().vmem_capacity_bytes)
    except Exception:
        cap = 64 * 1024 * 1024  # conservative (v7x per-TC) fallback
    return int(max(32 * 1024 * 1024,
                   min(cap - 8 * 1024 * 1024, 100 * 1024 * 1024)))


def _largest_aligned_divisor(total, max_tile, align):
    t = max(align, (min(max_tile, total) // align) * align)
    while total % t:
        t -= align
    return t


def prepare_ffn_weights(w1_t, b1, w2_t, b2, *, compute_dtype=jnp.bfloat16, align=256):
    """Pad + cast the weights ONCE (hoisted out of the per-call hot path).

    w1_t: [d_model, d_ff], w2_t: [d_ff, d_model] (transposed vs. PyTorch nn.Linear
    so the kernel runs plain row-major matmuls on the MXU).
    """
    d_model, d_ff = w1_t.shape
    d_model_pad = _round_up(d_model, align)
    d_ff_pad = _round_up(d_ff, align)
    return {
        "w1": jnp.pad(w1_t, ((0, d_model_pad - d_model),
                             (0, d_ff_pad - d_ff))).astype(compute_dtype),
        "w2": jnp.pad(w2_t, ((0, d_ff_pad - d_ff),
                             (0, d_model_pad - d_model))).astype(compute_dtype),
        "b1": jnp.pad(b1, (0, d_ff_pad - d_ff)).reshape(1, d_ff_pad).astype(jnp.float32),
        "b2": jnp.pad(b2, (0, d_model_pad - d_model)).reshape(1, d_model_pad).astype(jnp.float32),
        "d_model": d_model, "d_ff": d_ff,
        "d_model_pad": d_model_pad, "d_ff_pad": d_ff_pad,
        "compute_dtype": compute_dtype,
    }


def positionwise_feed_forward(x, params, *, tm=512, tf=1024):
    """x: [B, S, d_model]; params: output of prepare_ffn_weights."""
    B, S, d_model = x.shape
    assert d_model == params["d_model"]
    d_model_pad = params["d_model_pad"]
    d_ff_pad = params["d_ff_pad"]
    compute_dtype = params["compute_dtype"]
    out_dtype = x.dtype
    N = B * S

    vmem_limit = _vmem_limit_bytes()

    # Token tile: keep >= 2 blocks so the "parallel" axis can shard across v7x's two
    # TensorCores; otherwise use the largest tile that covers the problem.
    tm = min(tm, _round_up(N, 8))
    if N > 8 and _round_up(N, tm) // tm < 2:
        tm = _round_up((N + 1) // 2, 8)
    N_pad = _round_up(N, tm)

    # Zero padding is exactly neutral through GELU and the accumulation.
    x2d = jnp.pad(x.reshape(N, d_model),
                  ((0, N_pad - N), (0, d_model_pad - d_model))).astype(compute_dtype)

    cb = jnp.dtype(compute_dtype).itemsize
    ob = jnp.dtype(out_dtype).itemsize
    # Resident-path VMEM estimate (count BlockSpec double-buffering on every input).
    resident_need = (2 * 2 * d_model_pad * d_ff_pad * cb            # W1 + W2
                     + 2 * 4 * (d_ff_pad + d_model_pad)             # biases (f32)
                     + 2 * tm * d_model_pad * cb                    # x tile
                     + 2 * tm * d_model_pad * ob                    # out tile
                     + tm * d_ff_pad * (4 + 2 * cb))                # h (f32) + g (+slack)

    out_shape = jax.ShapeDtypeStruct((N_pad, d_model_pad), out_dtype)
    args = (x2d, params["w1"], params["b1"], params["w2"], params["b2"])

    if resident_need <= int(0.8 * vmem_limit):
        # ---- Weight-resident fast path: weights DMA'd once, 1-D token grid. ----
        out2d = pl.pallas_call(
            _ffn_resident_kernel,
            out_shape=out_shape,
            grid_spec=pltpu.PrefetchScalarGridSpec(
                num_scalar_prefetch=0,
                grid=(N_pad // tm,),
                in_specs=[
                    pl.BlockSpec((tm, d_model_pad), lambda i: (i, 0)),        # x tile
                    pl.BlockSpec((d_model_pad, d_ff_pad), lambda i: (0, 0)),  # W1 (resident)
                    pl.BlockSpec((1, d_ff_pad), lambda i: (0, 0)),            # b1
                    pl.BlockSpec((d_ff_pad, d_model_pad), lambda i: (0, 0)),  # W2 (resident)
                    pl.BlockSpec((1, d_model_pad), lambda i: (0, 0)),         # b2
                ],
                out_specs=pl.BlockSpec((tm, d_model_pad), lambda i: (i, 0)),
            ),
            compiler_params=pltpu.CompilerParams(
                dimension_semantics=("parallel",),
                vmem_limit_bytes=vmem_limit,
            ),
        )(*args)
    else:
        # ---- Streaming fallback: d_ff tiled on a trailing reduction axis. ----
        tf = _largest_aligned_divisor(d_ff_pad, tf, 256)
        out2d = pl.pallas_call(
            _ffn_stream_kernel,
            out_shape=out_shape,
            grid_spec=pltpu.PrefetchScalarGridSpec(
                num_scalar_prefetch=0,
                grid=(N_pad // tm, d_ff_pad // tf),                  # reduction axis last
                in_specs=[
                    pl.BlockSpec((tm, d_model_pad), lambda i, j: (i, 0)),   # x tile
                    pl.BlockSpec((d_model_pad, tf), lambda i, j: (0, j)),   # W1 slice
                    pl.BlockSpec((1, tf), lambda i, j: (0, j)),             # b1 slice
                    pl.BlockSpec((tf, d_model_pad), lambda i, j: (j, 0)),   # W2 slice
                    pl.BlockSpec((1, d_model_pad), lambda i, j: (0, 0)),    # b2
                ],
                out_specs=pl.BlockSpec((tm, d_model_pad), lambda i, j: (i, 0)),
                scratch_shapes=[pltpu.VMEM((tm, d_model_pad), jnp.float32)],
            ),
            compiler_params=pltpu.CompilerParams(
                dimension_semantics=("parallel", "arbitrary"),
                vmem_limit_bytes=vmem_limit,
            ),
        )(*args)

    return out2d[:N, :d_model].reshape(B, S, d_model)


def _ref_forward(x, w1_t, b1, w2_t, b2):
    h = jnp.einsum("bsd,df->bsf", x, w1_t) + b1
    g = 0.5 * h * (1.0 + jnp.tanh(_GELU_C * (h + 0.044715 * h ** 3)))
    return jnp.einsum("bsf,fd->bsd", g, w2_t) + b2


if __name__ == "__main__":
    # Small shapes consistent with the module: batch=2, seq=8, d_model=32, d_ff=128.
    B, S, d_model, d_ff = 2, 8, 32, 128

    key = jax.random.PRNGKey(0)
    kx, k1, k2, k3, k4 = jax.random.split(key, 5)

    x = jax.random.normal(kx, (B, S, d_model), dtype=jnp.float32)

    # Deterministic parameter init (PyTorch nn.Linear-style uniform bounds).
    bound1 = 1.0 / math.sqrt(d_model)
    bound2 = 1.0 / math.sqrt(d_ff)
    w1_t = jax.random.uniform(k1, (d_model, d_ff), jnp.float32, -bound1, bound1)
    b1 = jax.random.uniform(k2, (d_ff,), jnp.float32, -bound1, bound1)
    w2_t = jax.random.uniform(k3, (d_ff, d_model), jnp.float32, -bound2, bound2)
    b2 = jax.random.uniform(k4, (d_model,), jnp.float32, -bound2, bound2)

    # Pad / cast the weights ONCE (hoisted out of the per-call hot path).
    params = prepare_ffn_weights(w1_t, b1, w2_t, b2)

    out = positionwise_feed_forward(x, params)
    out = jax.block_until_ready(out)

    ref = _ref_forward(x, w1_t, b1, w2_t, b2)
    assert out.shape == (B, S, d_model)
    # bf16 MXU operands + bf16 GELU => bf16-appropriate tolerances vs f32 reference.
    assert jnp.allclose(out, ref, atol=3e-2, rtol=3e-2), "mismatch vs reference"

    print("KERNEL_OK")
</pallas_src>

<mosaic_0001>
module attributes {stable_mosaic.version = 11 : i64} {
  func.func @_ffn_resident_kernel(%arg0: i32, %arg1: memref<8x256xbf16, #tpu.memory_space<vmem>>, %arg2: memref<256x256xbf16, #tpu.memory_space<vmem>>, %arg3: memref<1x256xf32, #tpu.memory_space<vmem>>, %arg4: memref<256x256xbf16, #tpu.memory_space<vmem>>, %arg5: memref<1x256xf32, #tpu.memory_space<vmem>>, %arg6: memref<8x256xf32, #tpu.memory_space<vmem>>) attributes {dimension_semantics = [#tpu.dimension_semantics<parallel>], iteration_bounds = array<i64: 2>, scalar_prefetch = 0 : i64, scratch_operands = 0 : i64, tpu.core_type = #tpu.core_type<tc>, window_params = [{transform_indices = @transform_0, window_bounds = array<i64: 8, 256>}, {pipeline_mode = #tpu.pipeline_mode<synchronous>, transform_indices = @transform_1, window_bounds = array<i64: 256, 256>}, {pipeline_mode = #tpu.pipeline_mode<synchronous>, transform_indices = @transform_2, window_bounds = array<i64: 1, 256>}, {pipeline_mode = #tpu.pipeline_mode<synchronous>, transform_indices = @transform_3, window_bounds = array<i64: 256, 256>}, {pipeline_mode = #tpu.pipeline_mode<synchronous>, transform_indices = @transform_4, window_bounds = array<i64: 1, 256>}, {transform_indices = @transform_5, window_bounds = array<i64: 8, 256>}]} {
    %c0 = arith.constant 0 : index
    %c0_0 = arith.constant 0 : index
    %0 = vector.load %arg1[%c0, %c0_0] : memref<8x256xbf16, #tpu.memory_space<vmem>>, vector<8x256xbf16>
    %c0_1 = arith.constant 0 : index
    %c0_2 = arith.constant 0 : index
    %1 = vector.load %arg2[%c0_1, %c0_2] : memref<256x256xbf16, #tpu.memory_space<vmem>>, vector<256x256xbf16>
    %cst = arith.constant dense<0.000000e+00> : vector<8x256xf32>
    %2 = tpu.matmul %0, %1, %cst {dimension_numbers = #tpu.dot_dimension_numbers<[1], [0], [0], [1], [0, 0, 1, 1], [], []>} : vector<8x256xbf16>, vector<256x256xbf16>, vector<8x256xf32> -> vector<8x256xf32>
    %c0_3 = arith.constant 0 : index
    %c0_4 = arith.constant 0 : index
    %3 = vector.load %arg3[%c0_3, %c0_4] : memref<1x256xf32, #tpu.memory_space<vmem>>, vector<1x256xf32>
    %4 = vector.broadcast %3 : vector<1x256xf32> to vector<8x256xf32>
    %5 = arith.addf %2, %4 : vector<8x256xf32>
    %6 = arith.truncf %5 : vector<8x256xf32> to vector<8x256xbf16>
    %cst_5 = arith.constant 5.000000e-01 : bf16
    %7 = vector.broadcast %cst_5 : bf16 to vector<8x256xbf16>
    %8 = arith.mulf %7, %6 : vector<8x256xbf16>
    %cst_6 = arith.constant 4.467770e-02 : bf16
    %9 = vector.broadcast %cst_6 : bf16 to vector<8x256xbf16>
    %10 = arith.mulf %9, %6 : vector<8x256xbf16>
    %11 = arith.mulf %10, %6 : vector<8x256xbf16>
    %12 = arith.mulf %11, %6 : vector<8x256xbf16>
    %13 = arith.addf %6, %12 : vector<8x256xbf16>
    %cst_7 = arith.constant 7.968750e-01 : bf16
    %14 = vector.broadcast %cst_7 : bf16 to vector<8x256xbf16>
    %15 = arith.mulf %14, %13 : vector<8x256xbf16>
    %16 = math.tanh %15 : vector<8x256xbf16>
    %cst_8 = arith.constant 1.000000e+00 : bf16
    %17 = vector.broadcast %cst_8 : bf16 to vector<8x256xbf16>
    %18 = arith.addf %17, %16 : vector<8x256xbf16>
    %19 = arith.mulf %8, %18 : vector<8x256xbf16>
    %c0_9 = arith.constant 0 : index
    %c0_10 = arith.constant 0 : index
    %20 = vector.load %arg4[%c0_9, %c0_10] : memref<256x256xbf16, #tpu.memory_space<vmem>>, vector<256x256xbf16>
    %cst_11 = arith.constant dense<0.000000e+00> : vector<8x256xf32>
    %21 = tpu.matmul %19, %20, %cst_11 {dimension_numbers = #tpu.dot_dimension_numbers<[1], [0], [0], [1], [0, 0, 1, 1], [], []>} : vector<8x256xbf16>, vector<256x256xbf16>, vector<8x256xf32> -> vector<8x256xf32>
    %c0_12 = arith.constant 0 : index
    %c0_13 = arith.constant 0 : index
    %22 = vector.load %arg5[%c0_12, %c0_13] : memref<1x256xf32, #tpu.memory_space<vmem>>, vector<1x256xf32>
    %23 = vector.broadcast %22 : vector<1x256xf32> to vector<8x256xf32>
    %24 = arith.addf %21, %23 : vector<8x256xf32>
    %c0_14 = arith.constant 0 : index
    %c0_15 = arith.constant 0 : index
    %25 = vector.load %arg6[%c0_14, %c0_15] : memref<8x256xf32, #tpu.memory_space<vmem>>, vector<8x256xf32>
    tpu.vector_store %arg6[%c0_14, %c0_15], %24 {strides = array<i32>} : memref<8x256xf32, #tpu.memory_space<vmem>>, vector<8x256xf32>,
    return
  }
  func.func @transform_0(%arg0: i32) -> (i32, i32) {
    %c0_i32 = arith.constant 0 : i32
    %c0_i32_0 = arith.constant 0 : i32
    return %arg0, %c0_i32 : i32, i32
  }
  func.func @transform_1(%arg0: i32) -> (i32, i32) {
    %c0_i32 = arith.constant 0 : i32
    %c0_i32_0 = arith.constant 0 : i32
    %c0_i32_1 = arith.constant 0 : i32
    return %c0_i32, %c0_i32_0 : i32, i32
  }
  func.func @transform_2(%arg0: i32) -> (i32, i32) {
    %c0_i32 = arith.constant 0 : i32
    %c0_i32_0 = arith.constant 0 : i32
    %c0_i32_1 = arith.constant 0 : i32
    return %c0_i32, %c0_i32_0 : i32, i32
  }
  func.func @transform_3(%arg0: i32) -> (i32, i32) {
    %c0_i32 = arith.constant 0 : i32
    %c0_i32_0 = arith.constant 0 : i32
    %c0_i32_1 = arith.constant 0 : i32
    return %c0_i32, %c0_i32_0 : i32, i32
  }
  func.func @transform_4(%arg0: i32) -> (i32, i32) {
    %c0_i32 = arith.constant 0 : i32
    %c0_i32_0 = arith.constant 0 : i32
    %c0_i32_1 = arith.constant 0 : i32
    return %c0_i32, %c0_i32_0 : i32, i32
  }
  func.func @transform_5(%arg0: i32) -> (i32, i32) {
    %c0_i32 = arith.constant 0 : i32
    %c0_i32_0 = arith.constant 0 : i32
    return %arg0, %c0_i32 : i32, i32
  }
}

</mosaic_0001>

<llo_original>
// kernel: tpu_custom_call.1
$region0: #{tpu_custom_call.1}
  #allocation0 [shape = 'u32[]', space=smem, size = 0x4, offset = 0x4, fixed_abs, tag = 'smem constant byte address 0x4 - core index']
  #allocation1 [shape = 'u32[144,128]{1,0:T(1,128)}', space=vmem, size = 0x12000, scoped, tag = 'internal scratch']
  %s0 = inlined_call_operand.hbm [shape: bf16[16,256], index: 0, kind: input, shape index: {}]
  %s1 = inlined_call_operand.hbm [shape: bf16[256,256], index: 1, kind: input, shape index: {}]
  %s2 = inlined_call_operand.vmem [shape: f32[1,256], index: 2, kind: input, shape index: {}]
  %s3 = inlined_call_operand.hbm [shape: bf16[256,256], index: 3, kind: input, shape index: {}]
  %s4 = inlined_call_operand.vmem [shape: f32[1,256], index: 4, kind: input, shape index: {}]
  %s5 = inlined_call_operand.hbm [shape: f32[16,256], index: 5, kind: output, shape index: {}]
  %s6 = sld [smem:[#allocation0]]
  $region65: #{tpu_custom_call.1} parent=0
    _
  %s8 = ssub.s32 1, %s6
  %s9 = scalar_select 0, %s8, %s6
  $region1: #{tpu_custom_call.1} parent=0
    #allocation2 [shape = 'u8[8192]{0}', space=vmem, size = 0x2000, scoped, tag = 'input window, operand 0']
    #allocation3 [shape = 's32[2]{0}', space=sflag, size = 0x8, scoped, tag = 'scoped memory for tpu_custom_call.1']
    #allocation4 [shape = 's32[2]{0}', space=sflag, size = 0x8, scoped, tag = 'scoped memory for tpu_custom_call.1']
    #allocation5 [shape = 'u8[131072]{0}', space=vmem, size = 0x20000, scoped, tag = 'input window, operand 1, single buffered']
    #allocation6 [shape = 's32[1]{0}', space=sflag, size = 0x4, scoped, tag = 'scoped memory for tpu_custom_call.1']
    #allocation7 [shape = 'u8[131072]{0}', space=vmem, size = 0x20000, scoped, tag = 'input window, operand 3, single buffered']
    #allocation8 [shape = 'u8[16384]{0}', space=vmem, size = 0x4000, scoped, tag = 'output window, operand 0']
    %10 = vsyncpa [#allocation3], 0
    %s11 = scalar_lea.sflag [#allocation3], 1
    %12 = vsyncpa %s11, 0
    %13 = vsyncpa [#allocation6], 0
    %14 = vsyncpa [#allocation4], 0
    %s15 = scalar_lea.sflag [#allocation4], 1
    %16 = vsyncpa %s15, 0
    loop: start=0, step=1, limit=4
    $region2: #{tpu_custom_call.1} parent=1 // loop_pre_header
      _
    $region3: #{tpu_custom_call.1} parent=1 // loop_header
      %s18 = sphi 0, %s22
      %p19 = scmp.ge.s32.totalorder %s18, 4
      %s28 = sphi 0, %s30
      %s31 = sphi 0, %s28
      %s32 = sphi 0, %s31
      %s48 = sphi 0, %s32
      %s52 = sphi 0, %s52
      %s54 = sphi 0, %s52
      %s55 = sphi 0, %s54
      %s69 = sphi 0, %s55
      %s73 = sphi 0, %s73
      %s75 = sphi 0, %s73
      %s76 = sphi 0, %s75
      %s90 = sphi 0, %s76
      %s94 = sphi 0, %s94
      %s96 = sphi 0, %s94
      %s97 = sphi 0, %s96
      %s111 = sphi 0, %s97
      %s115 = sphi 0, %s115
      %s117 = sphi 0, %s115
      %s118 = sphi 0, %s117
      %s132 = sphi 0, %s118
      %s138 = sphi 0, %s140
      %s141 = sphi 0, %s138
      %s142 = sphi 0, %s141
      %s158 = sphi 0, %s142
    $region4: #{tpu_custom_call.1} parent=1 // loop_header_branch
      %21 = sbr.rel (%p19) target = $region8
    $region5: #{tpu_custom_call.1} parent=1 // loop_body
      %s23 = ssub.s32 %s18, 1
      %s24 = ssub.s32 %s18, 2
      %s25 = sadd.s32 %s18, 1
      %s26 = ssub.s32 %s18, %s25
      %p27 = scmp.eq.s32.totalorder %s26, 0
      %s29 = sadd.s32 %s28, 1
      %s30 = scalar_select %p27, %s28, %s29
      %p33 = pneg %p27
      %p34 = scmp.eq.s32.totalorder %s18, 1
      %p35 = por %p33, %p34
      %p36 = scmp.ne.s32.totalorder %s28, %s31
      %p37 = scmp.eq.s32.totalorder %s18, 0
      %p38 = por %p36, %p37
      %p39 = scmp.ne.s32.totalorder %s28, %s31
      %p40 = scmp.eq.s32.totalorder %s23, 1
      %p41 = por %p39, %p40
      %p42 = scmp.ne.s32.totalorder %s31, %s32
      %p43 = scmp.eq.s32.totalorder %s23, 0
      %p44 = por %p42, %p43
      %p45 = scmp.ne.s32.totalorder %s31, %s32
      %p46 = scmp.eq.s32.totalorder %s24, 1
      %p47 = por %p45, %p46
      %p49 = scmp.ne.s32.totalorder %s32, %s48
      %p50 = scmp.eq.s32.totalorder %s24, 0
      %p51 = por %p49, %p50
      %s53 = sadd.s32 %s52, 1
      %p56 = scmp.eq.s32.totalorder %s18, 1
      %p57 = scmp.ne.s32.totalorder %s52, %s54
      %p58 = scmp.eq.s32.totalorder %s18, 0
      %p59 = por %p57, %p58
      %p60 = scmp.ne.s32.totalorder %s52, %s54
      %p61 = scmp.eq.s32.totalorder %s23, 1
      %p62 = por %p60, %p61
      %p63 = scmp.ne.s32.totalorder %s54, %s55
      %p64 = scmp.eq.s32.totalorder %s23, 0
      %p65 = por %p63, %p64
      %p66 = scmp.ne.s32.totalorder %s54, %s55
      %p67 = scmp.eq.s32.totalorder %s24, 1
      %p68 = por %p66, %p67
      %p70 = scmp.ne.s32.totalorder %s55, %s69
      %p71 = scmp.eq.s32.totalorder %s24, 0
      %p72 = por %p70, %p71
      %s74 = sadd.s32 %s73, 1
      %p77 = scmp.eq.s32.totalorder %s18, 1
      %p78 = scmp.ne.s32.totalorder %s73, %s75
      %p79 = scmp.eq.s32.totalorder %s18, 0
      %p80 = por %p78, %p79
      %p81 = scmp.ne.s32.totalorder %s73, %s75
      %p82 = scmp.eq.s32.totalorder %s23, 1
      %p83 = por %p81, %p82
      %p84 = scmp.ne.s32.totalorder %s75, %s76
      %p85 = scmp.eq.s32.totalorder %s23, 0
      %p86 = por %p84, %p85
      %p87 = scmp.ne.s32.totalorder %s75, %s76
      %p88 = scmp.eq.s32.totalorder %s24, 1
      %p89 = por %p87, %p88
      %p91 = scmp.ne.s32.totalorder %s76, %s90
      %p92 = scmp.eq.s32.totalorder %s24, 0
      %p93 = por %p91, %p92
      %s95 = sadd.s32 %s94, 1
      %p98 = scmp.eq.s32.totalorder %s18, 1
      %p99 = scmp.ne.s32.totalorder %s94, %s96
      %p100 = scmp.eq.s32.totalorder %s18, 0
      %p101 = por %p99, %p100
      %p102 = scmp.ne.s32.totalorder %s94, %s96
      %p103 = scmp.eq.s32.totalorder %s23, 1
      %p104 = por %p102, %p103
      %p105 = scmp.ne.s32.totalorder %s96, %s97
      %p106 = scmp.eq.s32.totalorder %s23, 0
      %p107 = por %p105, %p106
      %p108 = scmp.ne.s32.totalorder %s96, %s97
      %p109 = scmp.eq.s32.totalorder %s24, 1
      %p110 = por %p108, %p109
      %p112 = scmp.ne.s32.totalorder %s97, %s111
      %p113 = scmp.eq.s32.totalorder %s24, 0
      %p114 = por %p112, %p113
      %s116 = sadd.s32 %s115, 1
      %p119 = scmp.eq.s32.totalorder %s18, 1
      %p120 = scmp.ne.s32.totalorder %s115, %s117
      %p121 = scmp.eq.s32.totalorder %s18, 0
      %p122 = por %p120, %p121
      %p123 = scmp.ne.s32.totalorder %s115, %s117
      %p124 = scmp.eq.s32.totalorder %s23, 1
      %p125 = por %p123, %p124
      %p126 = scmp.ne.s32.totalorder %s117, %s118
      %p127 = scmp.eq.s32.totalorder %s23, 0
      %p128 = por %p126, %p127
      %p129 = scmp.ne.s32.totalorder %s117, %s118
      %p130 = scmp.eq.s32.totalorder %s24, 1
      %p131 = por %p129, %p130
      %p133 = scmp.ne.s32.totalorder %s118, %s132
      %p134 = scmp.eq.s32.totalorder %s24, 0
      %p135 = por %p133, %p134
      %s136 = ssub.s32 %s18, %s25
      %p137 = scmp.eq.s32.totalorder %s136, 0
      %s139 = sadd.s32 %s138, 1
      %s140 = scalar_select %p137, %s138, %s139
      %p143 = pneg %p137
      %p144 = scmp.eq.s32.totalorder %s18, 1
      %p145 = por %p143, %p144
      %p146 = scmp.ne.s32.totalorder %s138, %s141
      %p147 = scmp.eq.s32.totalorder %s18, 0
      %p148 = por %p146, %p147
      %p149 = scmp.ne.s32.totalorder %s138, %s141
      %p150 = scmp.eq.s32.totalorder %s23, 1
      %p151 = por %p149, %p150
      %p152 = scmp.ne.s32.totalorder %s141, %s142
      %p153 = scmp.eq.s32.totalorder %s23, 0
      %p154 = por %p152, %p153
      %p155 = scmp.ne.s32.totalorder %s141, %s142
      %p156 = scmp.eq.s32.totalorder %s24, 1
      %p157 = por %p155, %p156
      %p159 = scmp.ne.s32.totalorder %s142, %s158
      %p160 = scmp.eq.s32.totalorder %s24, 0
      %p161 = por %p159, %p160
      %p162 = scmp.le.s32.totalorder 1, %s18
      %p163 = scmp.lt.s32.totalorder %s18, 3
      %p164 = pnand %p162, %p163
      %p165 = pneg %p164
      // Predicated region
      $region9: #{tpu_custom_call.1} parent=5 // pred_check
        _
      $region10: #{tpu_custom_call.1} parent=5 // pred_check_branch
        %167 = sbr.rel (%p164) target = $region12
      $region11: #{tpu_custom_call.1} parent=5 // pred_region
        %s168 = ssub.s32 %s18, 1
        // Predicated region
        $region13: #{tpu_custom_call.1} parent=11 // pred_check
          %p169 = pneg %p65
        $region14: #{tpu_custom_call.1} parent=11 // pred_check_branch
          %171 = sbr.rel (%p169) target = $region16
        $region15: #{tpu_custom_call.1} parent=11 // pred_region
          %s173 = ssub.s32 4096, 4096
          %174 = vsyncadd [#allocation6], %s173
          %s175 = sshll.u32 [#allocation5], 4
          %s176 = int_to_ptr.vmem [resolvable:$true] %s175
          %181 = dma.hbm_to_vmem [thread:$0]  %s1, 4096, %s176, [#allocation6], 128, 128, 8
        $region16: #{tpu_custom_call.1} parent=11 // pred_fallthru
          _
        // Predicated region
        $region17: #{tpu_custom_call.1} parent=11 // pred_check
          %p182 = pneg %p86
        $region18: #{tpu_custom_call.1} parent=11 // pred_check_branch
          %184 = sbr.rel (%p182) target = $region20
        $region19: #{tpu_custom_call.1} parent=11 // pred_region
          _
        $region20: #{tpu_custom_call.1} parent=11 // pred_fallthru
          _
        // Predicated region
        $region21: #{tpu_custom_call.1} parent=11 // pred_check
          %p185 = pneg %p107
        $region22: #{tpu_custom_call.1} parent=11 // pred_check_branch
          %187 = sbr.rel (%p185) target = $region24
        $region23: #{tpu_custom_call.1} parent=11 // pred_region
          %s189 = ssub.s32 4096, 4096
          %190 = vsyncadd [#allocation6], %s189
          %s191 = sshll.u32 [#allocation7], 4
          %s192 = int_to_ptr.vmem [resolvable:$true] %s191
          %197 = dma.hbm_to_vmem [thread:$0]  %s3, 4096, %s192, [#allocation6], 128, 128, 8
        $region24: #{tpu_custom_call.1} parent=11 // pred_fallthru
          _
        // Predicated region
        $region25: #{tpu_custom_call.1} parent=11 // pred_check
          %p198 = pneg %p128
        $region26: #{tpu_custom_call.1} parent=11 // pred_check_branch
          %200 = sbr.rel (%p198) target = $region28
        $region27: #{tpu_custom_call.1} parent=11 // pred_region
          _
        $region28: #{tpu_custom_call.1} parent=11 // pred_fallthru
          _
      $region12: #{tpu_custom_call.1} parent=5 // pred_fallthru
        _
      %p201 = scmp.lt.s32.totalorder %s18, 2
      // Predicated region
      $region29: #{tpu_custom_call.1} parent=5 // pred_check
        %p202 = pneg %p201
      $region30: #{tpu_custom_call.1} parent=5 // pred_check_branch
        %204 = sbr.rel (%p202) target = $region32
      $region31: #{tpu_custom_call.1} parent=5 // pred_region
        // Predicated region
        $region33: #{tpu_custom_call.1} parent=31 // pred_check
          %p205 = pneg %p38
        $region34: #{tpu_custom_call.1} parent=31 // pred_check_branch
          %207 = sbr.rel (%p205) target = $region36
        $region35: #{tpu_custom_call.1} parent=31 // pred_region
          %s208 = sand.u32 %s28, 1
          %s209 = scalar_lea.sflag [#allocation3], %s208
          %s210 = sand.u32 %s28, 1
          %s211 = smul.addr %s210, 8
          %s212 = scalar_lea.vmem [#allocation2], %s211
          %s214 = ssub.s32 128, 128
          %215 = vsyncadd %s209, %s214
          %s216 = smul.addr %s18, 2
          %s217 = smul.addr %s216, 64
          %s218 = scalar_lea.hbm %s0, %s217
          %s220 = sshll.u32 %s212, 4
          %s221 = int_to_ptr.vmem [resolvable:$true] %s220
          %223 = dma.hbm_to_vmem [thread:$0]  %s218, 128, %s221, %s209
        $region36: #{tpu_custom_call.1} parent=31 // pred_fallthru
          _
      $region32: #{tpu_custom_call.1} parent=5 // pred_fallthru
        _
      %p224 = scmp.le.s32.totalorder 1, %s18
      %p225 = scmp.lt.s32.totalorder %s18, 3
      %p226 = pnand %p224, %p225
      %p227 = pneg %p226
      // Predicated region
      $region37: #{tpu_custom_call.1} parent=5 // pred_check
        _
      $region38: #{tpu_custom_call.1} parent=5 // pred_check_branch
        %229 = sbr.rel (%p226) target = $region40
      $region39: #{tpu_custom_call.1} parent=5 // pred_region
        %s230 = ssub.s32 %s18, 1
        %s231 = sand.u32 %s31, 1
        %s232 = scalar_lea.sflag [#allocation3], %s231
        %s233 = sand.u32 %s31, 1
        %s234 = smul.addr %s233, 8
        %s235 = scalar_lea.vmem [#allocation2], %s234
        // Predicated region
        $region41: #{tpu_custom_call.1} parent=39 // pred_check
          %p236 = pneg %p44
        $region42: #{tpu_custom_call.1} parent=39 // pred_check_branch
          %238 = sbr.rel (%p236) target = $region44
        $region43: #{tpu_custom_call.1} parent=39 // pred_region
          %239 = dma.done %s232, 128
        $region44: #{tpu_custom_call.1} parent=39 // pred_fallthru
          _
        // Predicated region
        $region45: #{tpu_custom_call.1} parent=39 // pred_check
          %p240 = pneg %p65
        $region46: #{tpu_custom_call.1} parent=39 // pred_check_branch
          %242 = sbr.rel (%p240) target = $region48
        $region47: #{tpu_custom_call.1} parent=39 // pred_region
          %243 = dma.done [#allocation6], 4096
        $region48: #{tpu_custom_call.1} parent=39 // pred_fallthru
          _
        // Predicated region
        $region49: #{tpu_custom_call.1} parent=39 // pred_check
          %p244 = pneg %p107
        $region50: #{tpu_custom_call.1} parent=39 // pred_check_branch
          %246 = sbr.rel (%p244) target = $region52
        $region51: #{tpu_custom_call.1} parent=39 // pred_region
          %247 = dma.done [#allocation6], 4096
        $region52: #{tpu_custom_call.1} parent=39 // pred_fallthru
          _
        %s248 = sand.u32 %s31, 1
        %s249 = scalar_lea.sflag [#allocation3], %s248
        %s250 = sand.u32 %s31, 1
        %s251 = smul.addr %s250, 8
        %s252 = scalar_lea.vmem [#allocation2], %s251
        %p253 = pneg %p44
        %p254 = pneg %p41
        %p255 = pneg %p65
        %p256 = pneg %p62
        %p257 = pneg %p86
        %p258 = pneg %p83
        %p259 = pneg %p107
        %p260 = pneg %p104
        %p261 = pneg %p128
        %p262 = pneg %p125
        %p263 = pneg %p154
        %p264 = pneg %p151
        %s265 = sand.u32 %s141, 1
        %s266 = scalar_lea.sflag [#allocation4], %s265
        %s267 = sand.u32 %s141, 1
        %s268 = smul.addr %s267, 16
        %s269 = scalar_lea.vmem [#allocation8], %s268
        %v274 = vld [vmem:[%s235] sm:$0xff]
        %v275 = vld [vmem:[#allocation5] sm:$0xff]
        %v276 = vld [vmem:[#allocation5 + $0x8] sm:$0xff]
        %v277 = vld [vmem:[#allocation5 + $0x10] sm:$0xff]
        %v278 = vld [vmem:[#allocation5 + $0x18] sm:$0xff]
        %v279 = vld [vmem:[#allocation5 + $0x20] sm:$0xff]
        %v280 = vld [vmem:[#allocation5 + $0x28] sm:$0xff]
        %v281 = vld [vmem:[#allocation5 + $0x30] sm:$0xff]
        %v282 = vld [vmem:[#allocation5 + $0x38] sm:$0xff]
        %v283 = vld [vmem:[#allocation5 + $0x40] sm:$0xff]
        %v284 = vld [vmem:[#allocation5 + $0x48] sm:$0xff]
        %v285 = vld [vmem:[#allocation5 + $0x50] sm:$0xff]
        %v286 = vld [vmem:[#allocation5 + $0x58] sm:$0xff]
        %v287 = vld [vmem:[#allocation5 + $0x60] sm:$0xff]
        %v288 = vld [vmem:[#allocation5 + $0x68] sm:$0xff]
        %v289 = vld [vmem:[#allocation5 + $0x70] sm:$0xff]
        %v290 = vld [vmem:[#allocation5 + $0x78] sm:$0xff]
        %v291 = vld [vmem:[#allocation5 + $0x80] sm:$0xff]
        %v292 = vld [vmem:[#allocation5 + $0x88] sm:$0xff]
        %v293 = vld [vmem:[#allocation5 + $0x90] sm:$0xff]
        %v294 = vld [vmem:[#allocation5 + $0x98] sm:$0xff]
        %v295 = vld [vmem:[#allocation5 + $0xa0] sm:$0xff]
        %v296 = vld [vmem:[#allocation5 + $0xa8] sm:$0xff]
        %v297 = vld [vmem:[#allocation5 + $0xb0] sm:$0xff]
        %v298 = vld [vmem:[#allocation5 + $0xb8] sm:$0xff]
        %v299 = vld [vmem:[#allocation5 + $0xc0] sm:$0xff]
        %v300 = vld [vmem:[#allocation5 + $0xc8] sm:$0xff]
        %v301 = vld [vmem:[#allocation5 + $0xd0] sm:$0xff]
        %v302 = vld [vmem:[#allocation5 + $0xd8] sm:$0xff]
        %v303 = vld [vmem:[#allocation5 + $0xe0] sm:$0xff]
        %v304 = vld [vmem:[#allocation5 + $0xe8] sm:$0xff]
        %v305 = vld [vmem:[#allocation5 + $0xf0] sm:$0xff]
        %v306 = vld [vmem:[#allocation5 + $0xf8] sm:$0xff]
        %v307 = vld [vmem:[%s2] sm:$0x3]
        %v309 = vlaneseq
        %v310 = vshrl.u32 %v309, 7
        %v311 = vsub.s32 0, %v310
        %v312 = vrot.slane %v307, %v311
        %v313 = vlaneseq
        %v314 = vshrl.u32 %v313, 7
        %v315 = vsub.s32 1, %v314
        %v316 = vrot.slane %v307, %v315
        %v320 = vunpack.c.l.b16 %v274
        %v321 = vunpack.c.h.b16 %v274
        %v322 = vpack.c.b16 %v320, %v320
        %v323 = vpack.c.b16 %v321, %v321
        %v358 = vunpack.c.l.b16 %v275
        %v359 = vunpack.c.h.b16 %v275
        %v360 = vunpack.c.l.b16 %v276
        %v361 = vunpack.c.h.b16 %v276
        %v362 = vunpack.c.l.b16 %v277
        %v363 = vunpack.c.h.b16 %v277
        %v364 = vunpack.c.l.b16 %v278
        %v365 = vunpack.c.h.b16 %v278
        %v366 = vunpack.c.l.b16 %v279
        %v367 = vunpack.c.h.b16 %v279
        %v368 = vunpack.c.l.b16 %v280
        %v369 = vunpack.c.h.b16 %v280
        %v370 = vunpack.c.l.b16 %v281
        %v371 = vunpack.c.h.b16 %v281
        %v372 = vunpack.c.l.b16 %v282
        %v373 = vunpack.c.h.b16 %v282
        %v374 = vunpack.c.l.b16 %v283
        %v375 = vunpack.c.h.b16 %v283
        %v376 = vunpack.c.l.b16 %v284
        %v377 = vunpack.c.h.b16 %v284
        %v378 = vunpack.c.l.b16 %v285
        %v379 = vunpack.c.h.b16 %v285
        %v380 = vunpack.c.l.b16 %v286
        %v381 = vunpack.c.h.b16 %v286
        %v382 = vunpack.c.l.b16 %v287
        %v383 = vunpack.c.h.b16 %v287
        %v384 = vunpack.c.l.b16 %v288
        %v385 = vunpack.c.h.b16 %v288
        %v386 = vunpack.c.l.b16 %v289
        %v387 = vunpack.c.h.b16 %v289
        %v388 = vunpack.c.l.b16 %v290
        %v389 = vunpack.c.h.b16 %v290
        %v390 = vunpack.c.l.b16 %v291
        %v391 = vunpack.c.h.b16 %v291
        %v392 = vunpack.c.l.b16 %v292
        %v393 = vunpack.c.h.b16 %v292
        %v394 = vunpack.c.l.b16 %v293
        %v395 = vunpack.c.h.b16 %v293
        %v396 = vunpack.c.l.b16 %v294
        %v397 = vunpack.c.h.b16 %v294
        %v398 = vunpack.c.l.b16 %v295
        %v399 = vunpack.c.h.b16 %v295
        %v400 = vunpack.c.l.b16 %v296
        %v401 = vunpack.c.h.b16 %v296
        %v402 = vunpack.c.l.b16 %v297
        %v403 = vunpack.c.h.b16 %v297
        %v404 = vunpack.c.l.b16 %v298
        %v405 = vunpack.c.h.b16 %v298
        %v406 = vunpack.c.l.b16 %v299
        %v407 = vunpack.c.h.b16 %v299
        %v408 = vunpack.c.l.b16 %v300
        %v409 = vunpack.c.h.b16 %v300
        %v410 = vunpack.c.l.b16 %v301
        %v411 = vunpack.c.h.b16 %v301
        %v412 = vunpack.c.l.b16 %v302
        %v413 = vunpack.c.h.b16 %v302
        %v414 = vunpack.c.l.b16 %v303
        %v415 = vunpack.c.h.b16 %v303
        %v416 = vunpack.c.l.b16 %v304
        %v417 = vunpack.c.h.b16 %v304
        %v418 = vunpack.c.l.b16 %v305
        %v419 = vunpack.c.h.b16 %v305
        %v420 = vunpack.c.l.b16 %v306
        %v421 = vunpack.c.h.b16 %v306
        %v422 = vpack.c.b16 %v360, %v358
        %v423 = vpack.c.b16 %v361, %v359
        %v424 = vpack.c.b16 %v364, %v362
        %v425 = vpack.c.b16 %v365, %v363
        %v426 = vpack.c.b16 %v368, %v366
        %v427 = vpack.c.b16 %v369, %v367
        %v428 = vpack.c.b16 %v372, %v370
        %v429 = vpack.c.b16 %v373, %v371
        %v430 = vpack.c.b16 %v376, %v374
        %v431 = vpack.c.b16 %v377, %v375
        %v432 = vpack.c.b16 %v380, %v378
        %v433 = vpack.c.b16 %v381, %v379
        %v434 = vpack.c.b16 %v384, %v382
        %v435 = vpack.c.b16 %v385, %v383
        %v436 = vpack.c.b16 %v388, %v386
        %v437 = vpack.c.b16 %v389, %v387
        %v438 = vpack.c.b16 %v392, %v390
        %v439 = vpack.c.b16 %v393, %v391
        %v440 = vpack.c.b16 %v396, %v394
        %v441 = vpack.c.b16 %v397, %v395
        %v442 = vpack.c.b16 %v400, %v398
        %v443 = vpack.c.b16 %v401, %v399
        %v444 = vpack.c.b16 %v404, %v402
        %v445 = vpack.c.b16 %v405, %v403
        %v446 = vpack.c.b16 %v408, %v406
        %v447 = vpack.c.b16 %v409, %v407
        %v448 = vpack.c.b16 %v412, %v410
        %v449 = vpack.c.b16 %v413, %v411
        %v450 = vpack.c.b16 %v416, %v414
        %v451 = vpack.c.b16 %v417, %v415
        %v452 = vpack.c.b16 %v420, %v418
        %v453 = vpack.c.b16 %v421, %v419
        %486 = vmatprep.subr.bf16.mxu0 %v437
        %487 = vmatpush1.bf16.msra.mxu0 %v436
        %488 = vmatprep.subr.bf16.mxu0 %v435
        %489 = vmatpush1.bf16.msra.mxu0 %v434
        %490 = vmatprep.subr.bf16.mxu0 %v433
        %491 = vmatpush1.bf16.msra.mxu0 %v432
        %492 = vmatprep.subr.bf16.mxu0 %v431
        %493 = vmatpush1.bf16.msra.mxu0 %v430
        %494 = vmatprep.subr.bf16.mxu0 %v429
        %495 = vmatpush1.bf16.msra.mxu0 %v428
        %496 = vmatprep.subr.bf16.mxu0 %v427
        %497 = vmatpush1.bf16.msra.mxu0 %v426
        %498 = vmatprep.subr.bf16.mxu0 %v425
        %499 = vmatpush1.bf16.msra.mxu0 %v424
        %500 = vmatprep.subr.bf16.mxu0 %v423
        %501 = vmatpush1.bf16.msra.mxu0 %v422
        %502 = vmatprep.subr.bf16.mxu0 %v453
        %503 = vmatpush2.bf16.msra.mxu0 %v452
        %504 = vmatprep.subr.bf16.mxu0 %v451
        %505 = vmatpush2.bf16.msra.mxu0 %v450
        %506 = vmatprep.subr.bf16.mxu0 %v449
        %507 = vmatpush2.bf16.msra.mxu0 %v448
        %508 = vmatprep.subr.bf16.mxu0 %v447
        %509 = vmatpush2.bf16.msra.mxu0 %v446
        %510 = vmatprep.subr.bf16.mxu0 %v445
        %511 = vmatpush2.bf16.msra.mxu0 %v444
        %512 = vmatprep.subr.bf16.mxu0 %v443
        %513 = vmatpush2.bf16.msra.mxu0 %v442
        %514 = vmatprep.subr.bf16.mxu0 %v441
        %515 = vmatpush2.bf16.msra.mxu0 %v440
        %516 = vmatprep.subr.bf16.mxu0 %v439
        %517 = vmatpush2.bf16.msra.mxu0 %v438
        %518 = vmatprep.mubr.bf16.mxu0 %v323
        %519 = vmatmul.mubr.bf16.gmra.mxu0 %v322
        %v520 = vpop.f32.mrf.mxu0
        %v521 = vadd.f32 %v312, %v520
        %v522 = vpop.f32.mrf.mxu0
        %v523 = vadd.f32 %v316, %v522
        %v524 = vpop.f32.mrf.mxu0
        %v525 = vpop.f32.mrf.mxu0
        %526 = vdwg.mxu0
        %v527 = vpack.c.bf16 %v521, %v521
        %v528 = vpack.c.bf16 %v523, %v523
        %v529 = vmul.bf16 %v527, 1056980736
        %v530 = vmul.bf16 %v528, 1056980736
        %v531 = vmul.bf16 %v527, 1027030327
        %v532 = vmul.bf16 %v528, 1027030327
        %v533 = vmul.bf16 %v531, %v527
        %v534 = vmul.bf16 %v532, %v528
        %v535 = vmul.bf16 %v533, %v527
        %v536 = vmul.bf16 %v534, %v528
        %v537 = vadd.bf16 %v527, %v535
        %v538 = vadd.bf16 %v528, %v536
        %v539 = vmul.bf16 %v537, 1061961548
        %v540 = vmul.bf16 %v538, 1061961548
        %v541 = vtanh.bf16.pop %v539
        %v542 = vtanh.bf16.pop %v540
        %v543 = vadd.bf16 %v541, 1065369472
        %v544 = vadd.bf16 %v542, 1065369472
        %v545 = vmul.bf16 %v529, %v543
        %v546 = vmul.bf16 %v530, %v544
        %v547 = vld [vmem:[#allocation7] sm:$0xff]
        %v548 = vld [vmem:[#allocation7 + $0x8] sm:$0xff]
        %v549 = vld [vmem:[#allocation7 + $0x10] sm:$0xff]
        %v550 = vld [vmem:[#allocation7 + $0x18] sm:$0xff]
        %v551 = vld [vmem:[#allocation7 + $0x20] sm:$0xff]
        %v552 = vld [vmem:[#allocation7 + $0x28] sm:$0xff]
        %v553 = vld [vmem:[#allocation7 + $0x30] sm:$0xff]
        %v554 = vld [vmem:[#allocation7 + $0x38] sm:$0xff]
        %v555 = vld [vmem:[#allocation7 + $0x40] sm:$0xff]
        %v556 = vld [vmem:[#allocation7 + $0x48] sm:$0xff]
        %v557 = vld [vmem:[#allocation7 + $0x50] sm:$0xff]
        %v558 = vld [vmem:[#allocation7 + $0x58] sm:$0xff]
        %v559 = vld [vmem:[#allocation7 + $0x60] sm:$0xff]
        %v560 = vld [vmem:[#allocation7 + $0x68] sm:$0xff]
        %v561 = vld [vmem:[#allocation7 + $0x70] sm:$0xff]
        %v562 = vld [vmem:[#allocation7 + $0x78] sm:$0xff]
        %v563 = vld [vmem:[#allocation7 + $0x80] sm:$0xff]
        %v564 = vld [vmem:[#allocation7 + $0x88] sm:$0xff]
        %v565 = vld [vmem:[#allocation7 + $0x90] sm:$0xff]
        %v566 = vld [vmem:[#allocation7 + $0x98] sm:$0xff]
        %v567 = vld [vmem:[#allocation7 + $0xa0] sm:$0xff]
        %v568 = vld [vmem:[#allocation7 + $0xa8] sm:$0xff]
        %v569 = vld [vmem:[#allocation7 + $0xb0] sm:$0xff]
        %v570 = vld [vmem:[#allocation7 + $0xb8] sm:$0xff]
        %v571 = vld [vmem:[#allocation7 + $0xc0] sm:$0xff]
        %v572 = vld [vmem:[#allocation7 + $0xc8] sm:$0xff]
        %v573 = vld [vmem:[#allocation7 + $0xd0] sm:$0xff]
        %v574 = vld [vmem:[#allocation7 + $0xd8] sm:$0xff]
        %v575 = vld [vmem:[#allocation7 + $0xe0] sm:$0xff]
        %v576 = vld [vmem:[#allocation7 + $0xe8] sm:$0xff]
        %v577 = vld [vmem:[#allocation7 + $0xf0] sm:$0xff]
        %v578 = vld [vmem:[#allocation7 + $0xf8] sm:$0xff]
        %v579 = vld [vmem:[%s4] sm:$0x3]
        %v581 = vlaneseq
        %v582 = vshrl.u32 %v581, 7
        %v583 = vsub.s32 0, %v582
        %v584 = vrot.slane %v579, %v583
        %v585 = vlaneseq
        %v586 = vshrl.u32 %v585, 7
        %v587 = vsub.s32 1, %v586
        %v588 = vrot.slane %v579, %v587
        %v623 = vunpack.c.l.b16 %v547
        %v624 = vunpack.c.h.b16 %v547
        %v625 = vunpack.c.l.b16 %v548
        %v626 = vunpack.c.h.b16 %v548
        %v627 = vunpack.c.l.b16 %v549
        %v628 = vunpack.c.h.b16 %v549
        %v629 = vunpack.c.l.b16 %v550
        %v630 = vunpack.c.h.b16 %v550
        %v631 = vunpack.c.l.b16 %v551
        %v632 = vunpack.c.h.b16 %v551
        %v633 = vunpack.c.l.b16 %v552
        %v634 = vunpack.c.h.b16 %v552
        %v635 = vunpack.c.l.b16 %v553
        %v636 = vunpack.c.h.b16 %v553
        %v637 = vunpack.c.l.b16 %v554
        %v638 = vunpack.c.h.b16 %v554
        %v639 = vunpack.c.l.b16 %v555
        %v640 = vunpack.c.h.b16 %v555
        %v641 = vunpack.c.l.b16 %v556
        %v642 = vunpack.c.h.b16 %v556
        %v643 = vunpack.c.l.b16 %v557
        %v644 = vunpack.c.h.b16 %v557
        %v645 = vunpack.c.l.b16 %v558
        %v646 = vunpack.c.h.b16 %v558
        %v647 = vunpack.c.l.b16 %v559
        %v648 = vunpack.c.h.b16 %v559
        %v649 = vunpack.c.l.b16 %v560
        %v650 = vunpack.c.h.b16 %v560
        %v651 = vunpack.c.l.b16 %v561
        %v652 = vunpack.c.h.b16 %v561
        %v653 = vunpack.c.l.b16 %v562
        %v654 = vunpack.c.h.b16 %v562
        %v655 = vunpack.c.l.b16 %v563
        %v656 = vunpack.c.h.b16 %v563
        %v657 = vunpack.c.l.b16 %v564
        %v658 = vunpack.c.h.b16 %v564
        %v659 = vunpack.c.l.b16 %v565
        %v660 = vunpack.c.h.b16 %v565
        %v661 = vunpack.c.l.b16 %v566
        %v662 = vunpack.c.h.b16 %v566
        %v663 = vunpack.c.l.b16 %v567
        %v664 = vunpack.c.h.b16 %v567
        %v665 = vunpack.c.l.b16 %v568
        %v666 = vunpack.c.h.b16 %v568
        %v667 = vunpack.c.l.b16 %v569
        %v668 = vunpack.c.h.b16 %v569
        %v669 = vunpack.c.l.b16 %v570
        %v670 = vunpack.c.h.b16 %v570
        %v671 = vunpack.c.l.b16 %v571
        %v672 = vunpack.c.h.b16 %v571
        %v673 = vunpack.c.l.b16 %v572
        %v674 = vunpack.c.h.b16 %v572
        %v675 = vunpack.c.l.b16 %v573
        %v676 = vunpack.c.h.b16 %v573
        %v677 = vunpack.c.l.b16 %v574
        %v678 = vunpack.c.h.b16 %v574
        %v679 = vunpack.c.l.b16 %v575
        %v680 = vunpack.c.h.b16 %v575
        %v681 = vunpack.c.l.b16 %v576
        %v682 = vunpack.c.h.b16 %v576
        %v683 = vunpack.c.l.b16 %v577
        %v684 = vunpack.c.h.b16 %v577
        %v685 = vunpack.c.l.b16 %v578
        %v686 = vunpack.c.h.b16 %v578
        %v687 = vpack.c.b16 %v625, %v623
        %v688 = vpack.c.b16 %v626, %v624
        %v689 = vpack.c.b16 %v629, %v627
        %v690 = vpack.c.b16 %v630, %v628
        %v691 = vpack.c.b16 %v633, %v631
        %v692 = vpack.c.b16 %v634, %v632
        %v693 = vpack.c.b16 %v637, %v635
        %v694 = vpack.c.b16 %v638, %v636
        %v695 = vpack.c.b16 %v641, %v639
        %v696 = vpack.c.b16 %v642, %v640
        %v697 = vpack.c.b16 %v645, %v643
        %v698 = vpack.c.b16 %v646, %v644
        %v699 = vpack.c.b16 %v649, %v647
        %v700 = vpack.c.b16 %v650, %v648
        %v701 = vpack.c.b16 %v653, %v651
        %v702 = vpack.c.b16 %v654, %v652
        %v703 = vpack.c.b16 %v657, %v655
        %v704 = vpack.c.b16 %v658, %v656
        %v705 = vpack.c.b16 %v661, %v659
        %v706 = vpack.c.b16 %v662, %v660
        %v707 = vpack.c.b16 %v665, %v663
        %v708 = vpack.c.b16 %v666, %v664
        %v709 = vpack.c.b16 %v669, %v667
        %v710 = vpack.c.b16 %v670, %v668
        %v711 = vpack.c.b16 %v673, %v671
        %v712 = vpack.c.b16 %v674, %v672
        %v713 = vpack.c.b16 %v677, %v675
        %v714 = vpack.c.b16 %v678, %v676
        %v715 = vpack.c.b16 %v681, %v679
        %v716 = vpack.c.b16 %v682, %v680
        %v717 = vpack.c.b16 %v685, %v683
        %v718 = vpack.c.b16 %v686, %v684
        %751 = vmatprep.subr.bf16.mxu0 %v702
        %752 = vmatpush1.bf16.msra.mxu0 %v701
        %753 = vmatprep.subr.bf16.mxu0 %v700
        %754 = vmatpush1.bf16.msra.mxu0 %v699
        %755 = vmatprep.subr.bf16.mxu0 %v698
        %756 = vmatpush1.bf16.msra.mxu0 %v697
        %757 = vmatprep.subr.bf16.mxu0 %v696
        %758 = vmatpush1.bf16.msra.mxu0 %v695
        %759 = vmatprep.subr.bf16.mxu0 %v694
        %760 = vmatpush1.bf16.msra.mxu0 %v693
        %761 = vmatprep.subr.bf16.mxu0 %v692
        %762 = vmatpush1.bf16.msra.mxu0 %v691
        %763 = vmatprep.subr.bf16.mxu0 %v690
        %764 = vmatpush1.bf16.msra.mxu0 %v689
        %765 = vmatprep.subr.bf16.mxu0 %v688
        %766 = vmatpush1.bf16.msra.mxu0 %v687
        %767 = vmatprep.subr.bf16.mxu0 %v718
        %768 = vmatpush2.bf16.msra.mxu0 %v717
        %769 = vmatprep.subr.bf16.mxu0 %v716
        %770 = vmatpush2.bf16.msra.mxu0 %v715
        %771 = vmatprep.subr.bf16.mxu0 %v714
        %772 = vmatpush2.bf16.msra.mxu0 %v713
        %773 = vmatprep.subr.bf16.mxu0 %v712
        %774 = vmatpush2.bf16.msra.mxu0 %v711
        %775 = vmatprep.subr.bf16.mxu0 %v710
        %776 = vmatpush2.bf16.msra.mxu0 %v709
        %777 = vmatprep.subr.bf16.mxu0 %v708
        %778 = vmatpush2.bf16.msra.mxu0 %v707
        %779 = vmatprep.subr.bf16.mxu0 %v706
        %780 = vmatpush2.bf16.msra.mxu0 %v705
        %781 = vmatprep.subr.bf16.mxu0 %v704
        %782 = vmatpush2.bf16.msra.mxu0 %v703
        %783 = vmatprep.mubr.bf16.mxu0 %v546
        %784 = vmatmul.mubr.bf16.gmra.mxu0 %v545
        %v785 = vpop.f32.mrf.mxu0
        %v786 = vadd.f32 %v584, %v785
        %v787 = vpop.f32.mrf.mxu0
        %v788 = vadd.f32 %v588, %v787
        %v789 = vpop.f32.mrf.mxu0
        %v790 = vpop.f32.mrf.mxu0
        %791 = vdwg.mxu0
        %792 = vst [vmem:[%s269] sm:$0xff] %v786
        %793 = vst [vmem:[%s269 + $0x8] sm:$0xff] %v788
        %s794 = sand.u32 %s141, 1
        %s795 = scalar_lea.sflag [#allocation4], %s794
        %s796 = sand.u32 %s141, 1
        %s797 = smul.addr %s796, 16
        %s798 = scalar_lea.vmem [#allocation8], %s797
        // Predicated region
        $region53: #{tpu_custom_call.1} parent=39 // pred_check
          %p799 = pneg %p151
        $region54: #{tpu_custom_call.1} parent=39 // pred_check_branch
          %801 = sbr.rel (%p799) target = $region56
        $region55: #{tpu_custom_call.1} parent=39 // pred_region
          %s803 = ssub.s32 256, 256
          %804 = vsyncadd %s795, %s803
          %s805 = smul.addr %s23, 2
          %s806 = smul.addr %s805, 128
          %s807 = scalar_lea.hbm %s5, %s806
          %s809 = sshll.u32 %s798, 4
          %s810 = int_to_ptr.vmem [resolvable:$true] %s809
          %812 = dma.vmem_to_hbm [thread:$0]  %s810, 256, %s807, %s795
        $region56: #{tpu_custom_call.1} parent=39 // pred_fallthru
          _
      $region40: #{tpu_custom_call.1} parent=5 // pred_fallthru
        _
      %p813 = scmp.le.s32.totalorder 2, %s18
      // Predicated region
      $region57: #{tpu_custom_call.1} parent=5 // pred_check
        %p814 = pneg %p813
      $region58: #{tpu_custom_call.1} parent=5 // pred_check_branch
        %816 = sbr.rel (%p814) target = $region60
      $region59: #{tpu_custom_call.1} parent=5 // pred_region
        %s817 = ssub.s32 %s18, 2
        // Predicated region
        $region61: #{tpu_custom_call.1} parent=59 // pred_check
          %p818 = pneg %p157
        $region62: #{tpu_custom_call.1} parent=59 // pred_check_branch
          %820 = sbr.rel (%p818) target = $region64
        $region63: #{tpu_custom_call.1} parent=59 // pred_region
          %s821 = sand.u32 %s142, 1
          %s822 = scalar_lea.sflag [#allocation4], %s821
          %s823 = sand.u32 %s142, 1
          %s824 = smul.addr %s823, 16
          %s825 = scalar_lea.vmem [#allocation8], %s824
          %826 = dma.done %s822, 256
        $region64: #{tpu_custom_call.1} parent=59 // pred_fallthru
          _
      $region60: #{tpu_custom_call.1} parent=5 // pred_fallthru
        _
    $region6: #{tpu_custom_call.1} parent=1 // loop_footer
      %s22 = sadd.s32 1, %s18
    $region7: #{tpu_custom_call.1} parent=1 // loop_footer_branch
      %17 = sbr.rel target = $region3
    $region8: #{tpu_custom_call.1} parent=1 // loop_exit
      _
    %827 = vsyncpa [#allocation3], 1
    %s828 = scalar_lea.sflag [#allocation3], 1
    %829 = vsyncpa %s828, 1
    %830 = vsyncpa [#allocation6], 1
    %831 = vsyncpa [#allocation4], 1
    %s832 = scalar_lea.sflag [#allocation4], 1
    %833 = vsyncpa %s832, 1

</llo_original>
